<compile_context>
chip_gen: v7x
topology: tpu7x:2x2x1
jax: 0.10.0
libtpu: 0.0.40
codegen_flags: <defaults>
</compile_context>

<pallas_src>
import functools

import jax
import jax.numpy as jnp
from jax import lax
from jax.experimental import pallas as pl
from jax.experimental.pallas import tpu as pltpu


# ----------------------------------------------------------------------------
# Fused Pallas kernel: encoder + all three decoders
# ----------------------------------------------------------------------------
def _fused_gae_kernel(a_ref, x_ref, w1_ref, w2c_ref, wa_ref,
                      adj_ref, mod_ref, feat_ref, *, emb_dim, num_comm):
    a = a_ref[...]
    x = x_ref[...]

    # ---- encoder layer 1: H = relu(A @ (X @ W1)) ----
    xw = jnp.dot(x, w1_ref[...], preferred_element_type=jnp.float32)
    h = jnp.maximum(jnp.dot(a, xw, preferred_element_type=jnp.float32), 0.0)

    # ---- shared propagation A @ H (dominant N^2*hidden matmul, done once) ----
    ah = jnp.dot(a, h, preferred_element_type=jnp.float32)

    # ---- combined [Z | logits] = (A @ H) @ [W2 | Wc] (single wider matmul) ----
    zc = jnp.dot(ah, w2c_ref[...], preferred_element_type=jnp.float32)
    z = zc[:, :emb_dim]                                  # node embeddings
    logits = zc[:, emb_dim:emb_dim + num_comm]           # community logits

    # ---- community embeddings: softmax over communities ----
    m = jnp.max(logits, axis=-1, keepdims=True)
    e = jnp.exp(logits - m)
    c = e * pl.reciprocal(jnp.sum(e, axis=-1, keepdims=True), approx=True)

    # ---- community decoder: C @ C.T (contract last dims, no transpose) ----
    mod = lax.dot_general(c, c, (((1,), (1,)), ((), ())),
                          preferred_element_type=jnp.float32)

    # ---- attribute decoder: relu(A @ (Z @ Wa)) ----
    zwa = jnp.dot(z, wa_ref[...], preferred_element_type=jnp.float32)
    feat = jnp.maximum(jnp.dot(a, zwa, preferred_element_type=jnp.float32), 0.0)

    # ---- structure decoder: sigmoid(Z @ Z.T) ----
    g = lax.dot_general(z, z, (((1,), (1,)), ((), ())),
                        preferred_element_type=jnp.float32)
    adj = jax.nn.sigmoid(g)

    adj_ref[...] = adj.astype(adj_ref.dtype)
    mod_ref[...] = mod.astype(mod_ref.dtype)
    feat_ref[...] = feat.astype(feat_ref.dtype)


def _full_spec(shape):
    # Single-block spec: block == full array (small graph sizes fit VMEM).
    return pl.BlockSpec(shape, lambda: tuple(0 for _ in shape))


def _cost_estimate(n, f, hid, emb, comm):
    zc = emb + comm
    flops = 2 * (
        n * f * hid        # X @ W1
        + n * n * hid      # A @ (X W1)
        + n * n * hid      # A @ H (shared)
        + n * hid * zc     # (A H) @ [W2|Wc]
        + n * n * comm     # C @ C.T
        + n * emb * f      # Z @ Wa
        + n * n * f        # A @ (Z Wa)
        + n * n * emb      # Z @ Z.T
    )
    transcendentals = n * comm + n * n + n   # softmax exp, sigmoid, reciprocal
    bytes_accessed = 4 * (
        n * n + n * f + f * hid + hid * zc + emb * f   # inputs
        + 2 * n * n + n * f                            # outputs
    )
    return pl.CostEstimate(flops=flops,
                           transcendentals=transcendentals,
                           bytes_accessed=bytes_accessed)


def fused_community_gae(a, x, w1, w2c, wa, *, emb_dim, num_comm):
    n, f = x.shape
    hid = w1.shape[1]
    return pl.pallas_call(
        functools.partial(_fused_gae_kernel, emb_dim=emb_dim, num_comm=num_comm),
        out_shape=(
            jax.ShapeDtypeStruct((n, n), jnp.float32),   # rec_adjacency
            jax.ShapeDtypeStruct((n, n), jnp.float32),   # rec_modularity
            jax.ShapeDtypeStruct((n, f), jnp.float32),   # rec_features
        ),
        in_specs=[_full_spec(a.shape), _full_spec(x.shape),
                  _full_spec(w1.shape), _full_spec(w2c.shape),
                  _full_spec(wa.shape)],
        out_specs=(_full_spec((n, n)), _full_spec((n, n)), _full_spec((n, f))),
        cost_estimate=_cost_estimate(n, f, hid, emb_dim, num_comm),
        # TODO(synk): for N beyond a few hundred nodes the N x N decoders need a
        # 2-D output grid (tiles <= ~512x512 f32, both axes "parallel"); single
        # block is correct and fastest at these small shapes.
    )(a, x, w1, w2c, wa)


# ----------------------------------------------------------------------------
# Model wrapper (glue in plain JAX)
# ----------------------------------------------------------------------------
def init_params(key, num_features, hidden_dim, emb_dim, num_communities):
    k1, k2, k3, k4 = jax.random.split(key, 4)
    scale = 0.1
    return {
        "W1": scale * jax.random.normal(k1, (num_features, hidden_dim), jnp.float32),
        "W2": scale * jax.random.normal(k2, (hidden_dim, emb_dim), jnp.float32),
        "Wc": scale * jax.random.normal(k3, (hidden_dim, num_communities), jnp.float32),
        "Wa": scale * jax.random.normal(k4, (emb_dim, num_features), jnp.float32),
    }


def community_gae_forward(params, sample):
    a = sample["adjacency_matrix"]
    x = sample["node_features"]

    emb_dim = params["W2"].shape[1]
    num_comm = params["Wc"].shape[1]
    # Concatenate W2|Wc once so the second GCN propagation is a single matmul.
    w2c = jnp.concatenate([params["W2"], params["Wc"]], axis=1)

    rec_adjacency, rec_modularity, rec_features = fused_community_gae(
        a, x, params["W1"], w2c, params["Wa"],
        emb_dim=emb_dim, num_comm=num_comm)
    # TODO(synk): struct_decoder signature also takes A; canonical inner-product
    #             decoder ignores it, so A is unused in that branch.

    return {
        "adjacency_matrix": rec_adjacency,
        "modularity_matrix": rec_modularity,
        "node_features": rec_features,
    }


# ----------------------------------------------------------------------------
# Main
# ----------------------------------------------------------------------------
if __name__ == "__main__":
    num_nodes = 64
    num_features = 32
    hidden_dim = 32
    emb_dim = 16
    num_communities = 8

    key = jax.random.PRNGKey(0)
    ka, kx, kp = jax.random.split(key, 3)

    # Symmetric 0/1 adjacency with self-loops, row-normalized (D^-1 A).
    raw = (jax.random.uniform(ka, (num_nodes, num_nodes)) < 0.1).astype(jnp.float32)
    adj = jnp.maximum(raw, raw.T)
    adj = adj + jnp.eye(num_nodes, dtype=jnp.float32)
    adj = adj / jnp.sum(adj, axis=-1, keepdims=True)

    feats = jax.random.normal(kx, (num_nodes, num_features), jnp.float32)

    params = init_params(kp, num_features, hidden_dim, emb_dim, num_communities)
    sample = {"adjacency_matrix": adj, "node_features": feats}

    out = community_gae_forward(params, sample)
    out = jax.tree_util.tree_map(jax.block_until_ready, out)

    assert out["adjacency_matrix"].shape == (num_nodes, num_nodes)
    assert out["modularity_matrix"].shape == (num_nodes, num_nodes)
    assert out["node_features"].shape == (num_nodes, num_features)
    assert all(bool(jnp.all(jnp.isfinite(v))) for v in out.values())

    # Sanity: community softmax rows sum to 1 -> modularity diag in (0, 1].
    assert bool(jnp.all(jnp.diagonal(out["modularity_matrix"]) > 0.0))

    print("KERNEL_OK")
</pallas_src>

<mosaic_0001>
module attributes {stable_mosaic.version = 11 : i64} {
  func.func @_fused_gae_kernel(%arg0: memref<64x64xf32, #tpu.memory_space<vmem>>, %arg1: memref<64x32xf32, #tpu.memory_space<vmem>>, %arg2: memref<32x32xf32, #tpu.memory_space<vmem>>, %arg3: memref<32x24xf32, #tpu.memory_space<vmem>>, %arg4: memref<16x32xf32, #tpu.memory_space<vmem>>, %arg5: memref<64x64xf32, #tpu.memory_space<vmem>>, %arg6: memref<64x64xf32, #tpu.memory_space<vmem>>, %arg7: memref<64x32xf32, #tpu.memory_space<vmem>>) attributes {dimension_semantics = [], scalar_prefetch = 0 : i64, scratch_operands = 0 : i64, tpu.core_type = #tpu.core_type<tc>} {
    %c0 = arith.constant 0 : index
    %c0_0 = arith.constant 0 : index
    %0 = vector.load %arg0[%c0, %c0_0] : memref<64x64xf32, #tpu.memory_space<vmem>>, vector<64x64xf32>
    %c0_1 = arith.constant 0 : index
    %c0_2 = arith.constant 0 : index
    %1 = vector.load %arg1[%c0_1, %c0_2] : memref<64x32xf32, #tpu.memory_space<vmem>>, vector<64x32xf32>
    %c0_3 = arith.constant 0 : index
    %c0_4 = arith.constant 0 : index
    %2 = vector.load %arg2[%c0_3, %c0_4] : memref<32x32xf32, #tpu.memory_space<vmem>>, vector<32x32xf32>
    %cst = arith.constant dense<0.000000e+00> : vector<64x32xf32>
    %3 = tpu.matmul %1, %2, %cst {dimension_numbers = #tpu.dot_dimension_numbers<[1], [0], [0], [1], [0, 0, 1, 1], [], []>} : vector<64x32xf32>, vector<32x32xf32>, vector<64x32xf32> -> vector<64x32xf32>
    %cst_5 = arith.constant dense<0.000000e+00> : vector<64x32xf32>
    %4 = tpu.matmul %0, %3, %cst_5 {dimension_numbers = #tpu.dot_dimension_numbers<[1], [0], [0], [1], [0, 0, 1, 1], [], []>} : vector<64x64xf32>, vector<64x32xf32>, vector<64x32xf32> -> vector<64x32xf32>
    %cst_6 = arith.constant 0.000000e+00 : f32
    %5 = vector.broadcast %cst_6 : f32 to vector<64x32xf32>
    %6 = arith.maximumf %4, %5 : vector<64x32xf32>
    %cst_7 = arith.constant dense<0.000000e+00> : vector<64x32xf32>
    %7 = tpu.matmul %0, %6, %cst_7 {dimension_numbers = #tpu.dot_dimension_numbers<[1], [0], [0], [1], [0, 0, 1, 1], [], []>} : vector<64x64xf32>, vector<64x32xf32>, vector<64x32xf32> -> vector<64x32xf32>
    %c0_8 = arith.constant 0 : index
    %c0_9 = arith.constant 0 : index
    %8 = vector.load %arg3[%c0_8, %c0_9] : memref<32x24xf32, #tpu.memory_space<vmem>>, vector<32x24xf32>
    %cst_10 = arith.constant dense<0.000000e+00> : vector<64x24xf32>
    %9 = tpu.matmul %7, %8, %cst_10 {dimension_numbers = #tpu.dot_dimension_numbers<[1], [0], [0], [1], [0, 0, 1, 1], [], []>} : vector<64x32xf32>, vector<32x24xf32>, vector<64x24xf32> -> vector<64x24xf32>
    %10 = vector.extract_strided_slice %9 {offsets = [0, 0], sizes = [64, 16], strides = [1, 1]} : vector<64x24xf32> to vector<64x16xf32>
    %11 = vector.extract_strided_slice %9 {offsets = [0, 16], sizes = [64, 8], strides = [1, 1]} : vector<64x24xf32> to vector<64x8xf32>
    %cst_11 = arith.constant dense<0xFF800000> : vector<64xf32>
    %12 = vector.multi_reduction <maximumf>, %11, %cst_11 [1] : vector<64x8xf32> to vector<64xf32>
    %13 = vector.shape_cast %12 : vector<64xf32> to vector<64x1xf32>
    %14 = vector.broadcast %13 : vector<64x1xf32> to vector<64x8xf32>
    %15 = arith.subf %11, %14 : vector<64x8xf32>
    %16 = math.exp %15 : vector<64x8xf32>
    %cst_12 = arith.constant dense<0.000000e+00> : vector<64xf32>
    %17 = vector.multi_reduction <add>, %16, %cst_12 [1] : vector<64x8xf32> to vector<64xf32>
    %18 = vector.shape_cast %17 : vector<64xf32> to vector<64x1xf32>
    %19 = tpu.reciprocal %18 {approx = true} : vector<64x1xf32> -> vector<64x1xf32>
    %20 = vector.broadcast %19 : vector<64x1xf32> to vector<64x8xf32>
    %21 = arith.mulf %16, %20 : vector<64x8xf32>
    %cst_13 = arith.constant dense<0.000000e+00> : vector<64x64xf32>
    %22 = tpu.matmul %21, %21, %cst_13 {dimension_numbers = #tpu.dot_dimension_numbers<[1], [1], [0], [0], [0, 0, 1, 0], [], []>} : vector<64x8xf32>, vector<64x8xf32>, vector<64x64xf32> -> vector<64x64xf32>
    %c0_14 = arith.constant 0 : index
    %c0_15 = arith.constant 0 : index
    %23 = vector.load %arg4[%c0_14, %c0_15] : memref<16x32xf32, #tpu.memory_space<vmem>>, vector<16x32xf32>
    %cst_16 = arith.constant dense<0.000000e+00> : vector<64x32xf32>
    %24 = tpu.matmul %10, %23, %cst_16 {dimension_numbers = #tpu.dot_dimension_numbers<[1], [0], [0], [1], [0, 0, 1, 1], [], []>} : vector<64x16xf32>, vector<16x32xf32>, vector<64x32xf32> -> vector<64x32xf32>
    %cst_17 = arith.constant dense<0.000000e+00> : vector<64x32xf32>
    %25 = tpu.matmul %0, %24, %cst_17 {dimension_numbers = #tpu.dot_dimension_numbers<[1], [0], [0], [1], [0, 0, 1, 1], [], []>} : vector<64x64xf32>, vector<64x32xf32>, vector<64x32xf32> -> vector<64x32xf32>
    %cst_18 = arith.constant 0.000000e+00 : f32
    %26 = vector.broadcast %cst_18 : f32 to vector<64x32xf32>
    %27 = arith.maximumf %25, %26 : vector<64x32xf32>
    %cst_19 = arith.constant dense<0.000000e+00> : vector<64x64xf32>
    %28 = tpu.matmul %10, %10, %cst_19 {dimension_numbers = #tpu.dot_dimension_numbers<[1], [1], [0], [0], [0, 0, 1, 0], [], []>} : vector<64x16xf32>, vector<64x16xf32>, vector<64x64xf32> -> vector<64x64xf32>
    %29 = arith.negf %28 : vector<64x64xf32>
    %30 = math.exp %29 : vector<64x64xf32>
    %cst_20 = arith.constant 1.000000e+00 : f32
    %31 = vector.broadcast %cst_20 : f32 to vector<64x64xf32>
    %32 = arith.addf %31, %30 : vector<64x64xf32>
    %33 = arith.divf %31, %32 : vector<64x64xf32>
    %c0_21 = arith.constant 0 : index
    %c0_22 = arith.constant 0 : index
    %34 = vector.load %arg5[%c0_21, %c0_22] : memref<64x64xf32, #tpu.memory_space<vmem>>, vector<64x64xf32>
    tpu.vector_store %arg5[%c0_21, %c0_22], %33 {strides = array<i32>} : memref<64x64xf32, #tpu.memory_space<vmem>>, vector<64x64xf32>,
    %c0_23 = arith.constant 0 : index
    %c0_24 = arith.constant 0 : index
    %35 = vector.load %arg6[%c0_23, %c0_24] : memref<64x64xf32, #tpu.memory_space<vmem>>, vector<64x64xf32>
    tpu.vector_store %arg6[%c0_23, %c0_24], %22 {strides = array<i32>} : memref<64x64xf32, #tpu.memory_space<vmem>>, vector<64x64xf32>,
    %c0_25 = arith.constant 0 : index
    %c0_26 = arith.constant 0 : index
    %36 = vector.load %arg7[%c0_25, %c0_26] : memref<64x32xf32, #tpu.memory_space<vmem>>, vector<64x32xf32>
    tpu.vector_store %arg7[%c0_25, %c0_26], %27 {strides = array<i32>} : memref<64x32xf32, #tpu.memory_space<vmem>>, vector<64x32xf32>,
    return
  }
}

</mosaic_0001>

<llo_original>
// kernel: tpu_custom_call.1
$region0: #{tpu_custom_call.1}
  #allocation0 [shape = 'u32[]', space=smem, size = 0x4, offset = 0x4, fixed_abs, tag = 'smem constant byte address 0x4 - core index']
  #allocation1 [shape = 'u32[144,128]{1,0:T(1,128)}', space=vmem, size = 0x12000, scoped, tag = 'internal scratch']
  %s0 = inlined_call_operand.vmem [shape: f32[64,64], index: 0, kind: input, shape index: {}]
  %s1 = inlined_call_operand.vmem [shape: f32[64,32], index: 1, kind: input, shape index: {}]
  %s2 = inlined_call_operand.vmem [shape: f32[32,32], index: 2, kind: input, shape index: {}]
  %s3 = inlined_call_operand.vmem [shape: f32[32,24], index: 3, kind: input, shape index: {}]
  %s4 = inlined_call_operand.vmem [shape: f32[16,32], index: 4, kind: input, shape index: {}]
  %s5 = inlined_call_operand.hbm [shape: f32[64,64], index: 5, kind: output, shape index: {0}]
  %s6 = inlined_call_operand.hbm [shape: f32[64,64], index: 6, kind: output, shape index: {1}]
  %s7 = inlined_call_operand.vmem [shape: f32[64,32], index: 7, kind: output, shape index: {2}]
  %8 = xla_tuple %s5, %s6, %s7
  %s9 = sld [smem:[#allocation0]]
  $region46: #{tpu_custom_call.1} parent=0
    _
  %s11 = ssub.s32 1, %s9
  %s12 = scalar_select 0, %s11, %s9
  $region1: #{tpu_custom_call.1} parent=0
    #allocation2 [shape = 'u8[32768]{0}', space=vmem, size = 0x8000, scoped, tag = 'output window, operand 0, single buffered']
    #allocation3 [shape = 's32[1]{0}', space=sflag, size = 0x4, scoped, tag = 'scoped memory for tpu_custom_call.1']
    #allocation4 [shape = 'u8[32768]{0}', space=vmem, size = 0x8000, scoped, tag = 'output window, operand 1, single buffered']
    #allocation5 [shape = 's32[1]{0}', space=sflag, size = 0x4, scoped, tag = 'scoped memory for tpu_custom_call.1']
    %13 = vsyncpa [#allocation3], 0
    %14 = vsyncpa [#allocation5], 0
    // Predicated region
    $region2: #{tpu_custom_call.1} parent=1 // pred_check
      _
    $region3: #{tpu_custom_call.1} parent=1 // pred_check_branch
      %16 = sbr.rel (0) target = $region5
    $region4: #{tpu_custom_call.1} parent=1 // pred_region
      _
    $region5: #{tpu_custom_call.1} parent=1 // pred_fallthru
      _
    // Predicated region
    $region6: #{tpu_custom_call.1} parent=1 // pred_check
      _
    $region7: #{tpu_custom_call.1} parent=1 // pred_check_branch
      %18 = sbr.rel (0) target = $region9
    $region8: #{tpu_custom_call.1} parent=1 // pred_region
      _
    $region9: #{tpu_custom_call.1} parent=1 // pred_fallthru
      _
    // Predicated region
    $region10: #{tpu_custom_call.1} parent=1 // pred_check
      _
    $region11: #{tpu_custom_call.1} parent=1 // pred_check_branch
      %20 = sbr.rel (0) target = $region13
    $region12: #{tpu_custom_call.1} parent=1 // pred_region
      _
    $region13: #{tpu_custom_call.1} parent=1 // pred_fallthru
      _
    // Predicated region
    $region14: #{tpu_custom_call.1} parent=1 // pred_check
      _
    $region15: #{tpu_custom_call.1} parent=1 // pred_check_branch
      %22 = sbr.rel (0) target = $region17
    $region16: #{tpu_custom_call.1} parent=1 // pred_region
      _
    $region17: #{tpu_custom_call.1} parent=1 // pred_fallthru
      _
    // Predicated region
    $region18: #{tpu_custom_call.1} parent=1 // pred_check
      _
    $region19: #{tpu_custom_call.1} parent=1 // pred_check_branch
      %24 = sbr.rel (0) target = $region21
    $region20: #{tpu_custom_call.1} parent=1 // pred_region
      _
    $region21: #{tpu_custom_call.1} parent=1 // pred_fallthru
      _
    %v25 = vld [vmem:[%s0] sm:$0xff]
    %v26 = vld [vmem:[%s0 + $0x8] sm:$0xff]
    %v27 = vld [vmem:[%s0 + $0x10] sm:$0xff]
    %v28 = vld [vmem:[%s0 + $0x18] sm:$0xff]
    %v29 = vld [vmem:[%s0 + $0x20] sm:$0xff]
    %v30 = vld [vmem:[%s0 + $0x28] sm:$0xff]
    %v31 = vld [vmem:[%s0 + $0x30] sm:$0xff]
    %v32 = vld [vmem:[%s0 + $0x38] sm:$0xff]
    %v33 = vld [vmem:[%s1] sm:$0xff]
    %v34 = vld [vmem:[%s1 + $0x8] sm:$0xff]
    %v35 = vld [vmem:[%s1 + $0x10] sm:$0xff]
    %v36 = vld [vmem:[%s1 + $0x18] sm:$0xff]
    %v37 = vld [vmem:[%s1 + $0x20] sm:$0xff]
    %v38 = vld [vmem:[%s1 + $0x28] sm:$0xff]
    %v39 = vld [vmem:[%s1 + $0x30] sm:$0xff]
    %v40 = vld [vmem:[%s1 + $0x38] sm:$0xff]
    %v41 = vld [vmem:[%s2] sm:$0xff]
    %v42 = vld [vmem:[%s2 + $0x8] sm:$0xff]
    %v43 = vld [vmem:[%s2 + $0x10] sm:$0xff]
    %v44 = vld [vmem:[%s2 + $0x18] sm:$0xff]
    %vm45 = vcmask 261120
    %v47 = vsel %vm45, %v33, 0
    %v50 = vsel %vm45, %v34, 0
    %v53 = vsel %vm45, %v35, 0
    %v56 = vsel %vm45, %v36, 0
    %v59 = vsel %vm45, %v37, 0
    %v62 = vsel %vm45, %v38, 0
    %v65 = vsel %vm45, %v39, 0
    %v68 = vsel %vm45, %v40, 0
    %70 = vmatprep.subr.mxu0 0.0
    %71 = vmatpush1.msra.mxu0 %v41
    %72 = vmatprep.subr.mxu0 0.0
    %73 = vmatpush1.msra.mxu0 %v42
    %74 = vmatprep.subr.mxu0 0.0
    %75 = vmatpush1.msra.mxu0 %v43
    %76 = vmatprep.subr.mxu0 0.0
    %77 = vmatpush1.msra.mxu0 %v44
    %78 = vmatprep.subr.mxu0 0.0
    %79 = vmatpush1.msra.mxu0 0.0
    %80 = vmatprep.subr.mxu0 0.0
    %81 = vmatpush1.msra.mxu0 0.0
    %82 = vmatprep.subr.mxu0 0.0
    %83 = vmatpush1.msra.mxu0 0.0
    %84 = vmatprep.subr.mxu0 0.0
    %85 = vmatpush1.msra.mxu0 0.0
    %86 = vmatprep.subr.mxu0 0.0
    %87 = vmatpush1.msra.mxu0 0.0
    %88 = vmatprep.subr.mxu0 0.0
    %89 = vmatpush1.msra.mxu0 0.0
    %90 = vmatprep.subr.mxu0 0.0
    %91 = vmatpush1.msra.mxu0 0.0
    %92 = vmatprep.subr.mxu0 0.0
    %93 = vmatpush1.msra.mxu0 0.0
    %94 = vmatprep.subr.mxu0 0.0
    %95 = vmatpush1.msra.mxu0 0.0
    %96 = vmatprep.subr.mxu0 0.0
    %97 = vmatpush1.msra.mxu0 0.0
    %98 = vmatprep.subr.mxu0 0.0
    %99 = vmatpush1.msra.mxu0 0.0
    %100 = vmatprep.subr.mxu0 0.0
    %101 = vmatpush1.msra.mxu0 0.0
    %102 = vmatprep.subr.mxu0 0.0
    %103 = vmatpush1.msra.mxu0 0.0
    %104 = vmatprep.subr.mxu0 0.0
    %105 = vmatpush1.msra.mxu0 0.0
    %106 = vmatprep.subr.mxu0 0.0
    %107 = vmatpush1.msra.mxu0 0.0
    %108 = vmatprep.subr.mxu0 0.0
    %109 = vmatpush1.msra.mxu0 0.0
    %110 = vmatprep.subr.mxu0 0.0
    %111 = vmatpush1.msra.mxu0 0.0
    %112 = vmatprep.subr.mxu0 0.0
    %113 = vmatpush1.msra.mxu0 0.0
    %114 = vmatprep.subr.mxu0 0.0
    %115 = vmatpush1.msra.mxu0 0.0
    %116 = vmatprep.subr.mxu0 0.0
    %117 = vmatpush1.msra.mxu0 0.0
    %118 = vmatprep.subr.mxu0 0.0
    %119 = vmatpush1.msra.mxu0 0.0
    %120 = vmatprep.subr.mxu0 0.0
    %121 = vmatpush1.msra.mxu0 0.0
    %122 = vmatprep.subr.mxu0 0.0
    %123 = vmatpush1.msra.mxu0 0.0
    %124 = vmatprep.subr.mxu0 0.0
    %125 = vmatpush1.msra.mxu0 0.0
    %126 = vmatprep.subr.mxu0 0.0
    %127 = vmatpush1.msra.mxu0 0.0
    %128 = vmatprep.subr.mxu0 0.0
    %129 = vmatpush1.msra.mxu0 0.0
    %130 = vmatprep.subr.mxu0 0.0
    %131 = vmatpush1.msra.mxu0 0.0
    %132 = vmatprep.subr.mxu0 0.0
    %133 = vmatpush1.msra.mxu0 0.0
    %134 = vmatprep.mubr.f32.mxu0 0.0
    %135 = vmatmul.mubr.f32.gmra.mrb[0].mxu0 %v47
    %v136 = vpop.f32.mrb[0].mxu0
    %v137 = vadd.f32 0.0, %v136
    %v138 = vpop.f32.mrb[0].mxu0
    %139 = vmatprep.mubr.f32.mxu0 0.0
    %140 = vmatmul.mubr.f32.gmra.mrb[0].mxu0 %v50
    %v141 = vpop.f32.mrb[0].mxu0
    %v142 = vadd.f32 0.0, %v141
    %v143 = vpop.f32.mrb[0].mxu0
    %144 = vmatprep.mubr.f32.mxu0 0.0
    %145 = vmatmul.mubr.f32.gmra.mrb[0].mxu0 %v53
    %v146 = vpop.f32.mrb[0].mxu0
    %v147 = vadd.f32 0.0, %v146
    %v148 = vpop.f32.mrb[0].mxu0
    %149 = vmatprep.mubr.f32.mxu0 0.0
    %150 = vmatmul.mubr.f32.gmra.mrb[0].mxu0 %v56
    %v151 = vpop.f32.mrb[0].mxu0
    %v152 = vadd.f32 0.0, %v151
    %v153 = vpop.f32.mrb[0].mxu0
    %154 = vmatprep.mubr.f32.mxu0 0.0
    %155 = vmatmul.mubr.f32.gmra.mrb[0].mxu0 %v59
    %v156 = vpop.f32.mrb[0].mxu0
    %v157 = vadd.f32 0.0, %v156
    %v158 = vpop.f32.mrb[0].mxu0
    %159 = vmatprep.mubr.f32.mxu0 0.0
    %160 = vmatmul.mubr.f32.gmra.mrb[0].mxu0 %v62
    %v161 = vpop.f32.mrb[0].mxu0
    %v162 = vadd.f32 0.0, %v161
    %v163 = vpop.f32.mrb[0].mxu0
    %164 = vmatprep.mubr.f32.mxu0 0.0
    %165 = vmatmul.mubr.f32.gmra.mrb[0].mxu0 %v65
    %v166 = vpop.f32.mrb[0].mxu0
    %v167 = vadd.f32 0.0, %v166
    %v168 = vpop.f32.mrb[0].mxu0
    %169 = vmatprep.mubr.f32.mxu0 0.0
    %170 = vmatmul.mubr.f32.gmra.mrb[0].mxu0 %v68
    %v171 = vpop.f32.mrb[0].mxu0
    %v172 = vadd.f32 0.0, %v171
    %v173 = vpop.f32.mrb[0].mxu0
    %174 = vdwg.mxu0
    %vm175 = vcmask 523264
    %v177 = vsel %vm175, %v25, 0
    %v180 = vsel %vm175, %v26, 0
    %v183 = vsel %vm175, %v27, 0
    %v186 = vsel %vm175, %v28, 0
    %v189 = vsel %vm175, %v29, 0
    %v192 = vsel %vm175, %v30, 0
    %v195 = vsel %vm175, %v31, 0
    %v198 = vsel %vm175, %v32, 0
    %200 = vmatprep.subr.mxu0 0.0
    %201 = vmatpush1.msra.mxu0 %v137
    %202 = vmatprep.subr.mxu0 0.0
    %203 = vmatpush1.msra.mxu0 %v142
    %204 = vmatprep.subr.mxu0 0.0
    %205 = vmatpush1.msra.mxu0 %v147
    %206 = vmatprep.subr.mxu0 0.0
    %207 = vmatpush1.msra.mxu0 %v152
    %208 = vmatprep.subr.mxu0 0.0
    %209 = vmatpush1.msra.mxu0 %v157
    %210 = vmatprep.subr.mxu0 0.0
    %211 = vmatpush1.msra.mxu0 %v162
    %212 = vmatprep.subr.mxu0 0.0
    %213 = vmatpush1.msra.mxu0 %v167
    %214 = vmatprep.subr.mxu0 0.0
    %215 = vmatpush1.msra.mxu0 %v172
    %216 = vmatprep.subr.mxu0 0.0
    %217 = vmatpush1.msra.mxu0 0.0
    %218 = vmatprep.subr.mxu0 0.0
    %219 = vmatpush1.msra.mxu0 0.0
    %220 = vmatprep.subr.mxu0 0.0
    %221 = vmatpush1.msra.mxu0 0.0
    %222 = vmatprep.subr.mxu0 0.0
    %223 = vmatpush1.msra.mxu0 0.0
    %224 = vmatprep.subr.mxu0 0.0
    %225 = vmatpush1.msra.mxu0 0.0
    %226 = vmatprep.subr.mxu0 0.0
    %227 = vmatpush1.msra.mxu0 0.0
    %228 = vmatprep.subr.mxu0 0.0
    %229 = vmatpush1.msra.mxu0 0.0
    %230 = vmatprep.subr.mxu0 0.0
    %231 = vmatpush1.msra.mxu0 0.0
    %232 = vmatprep.subr.mxu0 0.0
    %233 = vmatpush1.msra.mxu0 0.0
    %234 = vmatprep.subr.mxu0 0.0
    %235 = vmatpush1.msra.mxu0 0.0
    %236 = vmatprep.subr.mxu0 0.0
    %237 = vmatpush1.msra.mxu0 0.0
    %238 = vmatprep.subr.mxu0 0.0
    %239 = vmatpush1.msra.mxu0 0.0
    %240 = vmatprep.subr.mxu0 0.0
    %241 = vmatpush1.msra.mxu0 0.0
    %242 = vmatprep.subr.mxu0 0.0
    %243 = vmatpush1.msra.mxu0 0.0
    %244 = vmatprep.subr.mxu0 0.0
    %245 = vmatpush1.msra.mxu0 0.0
    %246 = vmatprep.subr.mxu0 0.0
    %247 = vmatpush1.msra.mxu0 0.0
    %248 = vmatprep.subr.mxu0 0.0
    %249 = vmatpush1.msra.mxu0 0.0
    %250 = vmatprep.subr.mxu0 0.0
    %251 = vmatpush1.msra.mxu0 0.0
    %252 = vmatprep.subr.mxu0 0.0
    %253 = vmatpush1.msra.mxu0 0.0
    %254 = vmatprep.subr.mxu0 0.0
    %255 = vmatpush1.msra.mxu0 0.0
    %256 = vmatprep.subr.mxu0 0.0
    %257 = vmatpush1.msra.mxu0 0.0
    %258 = vmatprep.subr.mxu0 0.0
    %259 = vmatpush1.msra.mxu0 0.0
    %260 = vmatprep.subr.mxu0 0.0
    %261 = vmatpush1.msra.mxu0 0.0
    %262 = vmatprep.subr.mxu0 0.0
    %263 = vmatpush1.msra.mxu0 0.0
    %264 = vmatprep.mubr.f32.mxu0 0.0
    %265 = vmatmul.mubr.f32.gmra.mrb[0].mxu0 %v177
    %v266 = vpop.f32.mrb[0].mxu0
    %v267 = vadd.f32 0.0, %v266
    %v268 = vpop.f32.mrb[0].mxu0
    %269 = vmatprep.mubr.f32.mxu0 0.0
    %270 = vmatmul.mubr.f32.gmra.mrb[0].mxu0 %v180
    %v271 = vpop.f32.mrb[0].mxu0
    %v272 = vadd.f32 0.0, %v271
    %v273 = vpop.f32.mrb[0].mxu0
    %274 = vmatprep.mubr.f32.mxu0 0.0
    %275 = vmatmul.mubr.f32.gmra.mrb[0].mxu0 %v183
    %v276 = vpop.f32.mrb[0].mxu0
    %v277 = vadd.f32 0.0, %v276
    %v278 = vpop.f32.mrb[0].mxu0
    %279 = vmatprep.mubr.f32.mxu0 0.0
    %280 = vmatmul.mubr.f32.gmra.mrb[0].mxu0 %v186
    %v281 = vpop.f32.mrb[0].mxu0
    %v282 = vadd.f32 0.0, %v281
    %v283 = vpop.f32.mrb[0].mxu0
    %284 = vmatprep.mubr.f32.mxu0 0.0
    %285 = vmatmul.mubr.f32.gmra.mrb[0].mxu0 %v189
    %v286 = vpop.f32.mrb[0].mxu0
    %v287 = vadd.f32 0.0, %v286
    %v288 = vpop.f32.mrb[0].mxu0
    %289 = vmatprep.mubr.f32.mxu0 0.0
    %290 = vmatmul.mubr.f32.gmra.mrb[0].mxu0 %v192
    %v291 = vpop.f32.mrb[0].mxu0
    %v292 = vadd.f32 0.0, %v291
    %v293 = vpop.f32.mrb[0].mxu0
    %294 = vmatprep.mubr.f32.mxu0 0.0
    %295 = vmatmul.mubr.f32.gmra.mrb[0].mxu0 %v195
    %v296 = vpop.f32.mrb[0].mxu0
    %v297 = vadd.f32 0.0, %v296
    %v298 = vpop.f32.mrb[0].mxu0
    %299 = vmatprep.mubr.f32.mxu0 0.0
    %300 = vmatmul.mubr.f32.gmra.mrb[0].mxu0 %v198
    %v301 = vpop.f32.mrb[0].mxu0
    %v302 = vadd.f32 0.0, %v301
    %v303 = vpop.f32.mrb[0].mxu0
    %304 = vdwg.mxu0
    %v305 = vmax.f32 %v267, 0.0
    %v306 = vmax.f32 %v272, 0.0
    %v307 = vmax.f32 %v277, 0.0
    %v308 = vmax.f32 %v282, 0.0
    %v309 = vmax.f32 %v287, 0.0
    %v310 = vmax.f32 %v292, 0.0
    %v311 = vmax.f32 %v297, 0.0
    %v312 = vmax.f32 %v302, 0.0
    %313 = vmatprep.subr.mxu0 0.0
    %314 = vmatpush1.msra.mxu0 %v305
    %315 = vmatprep.subr.mxu0 0.0
    %316 = vmatpush1.msra.mxu0 %v306
    %317 = vmatprep.subr.mxu0 0.0
    %318 = vmatpush1.msra.mxu0 %v307
    %319 = vmatprep.subr.mxu0 0.0
    %320 = vmatpush1.msra.mxu0 %v308
    %321 = vmatprep.subr.mxu0 0.0
    %322 = vmatpush1.msra.mxu0 %v309
    %323 = vmatprep.subr.mxu0 0.0
    %324 = vmatpush1.msra.mxu0 %v310
    %325 = vmatprep.subr.mxu0 0.0
    %326 = vmatpush1.msra.mxu0 %v311
    %327 = vmatprep.subr.mxu0 0.0
    %328 = vmatpush1.msra.mxu0 %v312
    %329 = vmatprep.subr.mxu0 0.0
    %330 = vmatpush1.msra.mxu0 0.0
    %331 = vmatprep.subr.mxu0 0.0
    %332 = vmatpush1.msra.mxu0 0.0
    %333 = vmatprep.subr.mxu0 0.0
    %334 = vmatpush1.msra.mxu0 0.0
    %335 = vmatprep.subr.mxu0 0.0
    %336 = vmatpush1.msra.mxu0 0.0
    %337 = vmatprep.subr.mxu0 0.0
    %338 = vmatpush1.msra.mxu0 0.0
    %339 = vmatprep.subr.mxu0 0.0
    %340 = vmatpush1.msra.mxu0 0.0
    %341 = vmatprep.subr.mxu0 0.0
    %342 = vmatpush1.msra.mxu0 0.0
    %343 = vmatprep.subr.mxu0 0.0
    %344 = vmatpush1.msra.mxu0 0.0
    %345 = vmatprep.subr.mxu0 0.0
    %346 = vmatpush1.msra.mxu0 0.0
    %347 = vmatprep.subr.mxu0 0.0
    %348 = vmatpush1.msra.mxu0 0.0
    %349 = vmatprep.subr.mxu0 0.0
    %350 = vmatpush1.msra.mxu0 0.0
    %351 = vmatprep.subr.mxu0 0.0
    %352 = vmatpush1.msra.mxu0 0.0
    %353 = vmatprep.subr.mxu0 0.0
    %354 = vmatpush1.msra.mxu0 0.0
    %355 = vmatprep.subr.mxu0 0.0
    %356 = vmatpush1.msra.mxu0 0.0
    %357 = vmatprep.subr.mxu0 0.0
    %358 = vmatpush1.msra.mxu0 0.0
    %359 = vmatprep.subr.mxu0 0.0
    %360 = vmatpush1.msra.mxu0 0.0
    %361 = vmatprep.subr.mxu0 0.0
    %362 = vmatpush1.msra.mxu0 0.0
    %363 = vmatprep.subr.mxu0 0.0
    %364 = vmatpush1.msra.mxu0 0.0
    %365 = vmatprep.subr.mxu0 0.0
    %366 = vmatpush1.msra.mxu0 0.0
    %367 = vmatprep.subr.mxu0 0.0
    %368 = vmatpush1.msra.mxu0 0.0
    %369 = vmatprep.subr.mxu0 0.0
    %370 = vmatpush1.msra.mxu0 0.0
    %371 = vmatprep.subr.mxu0 0.0
    %372 = vmatpush1.msra.mxu0 0.0
    %373 = vmatprep.subr.mxu0 0.0
    %374 = vmatpush1.msra.mxu0 0.0
    %375 = vmatprep.subr.mxu0 0.0
    %376 = vmatpush1.msra.mxu0 0.0
    %377 = vmatprep.mubr.f32.mxu0 0.0
    %378 = vmatmul.mubr.f32.gmra.mrb[0].mxu0 %v177
    %v379 = vpop.f32.mrb[0].mxu0
    %v380 = vadd.f32 0.0, %v379
    %v381 = vpop.f32.mrb[0].mxu0
    %382 = vmatprep.mubr.f32.mxu0 0.0
    %383 = vmatmul.mubr.f32.gmra.mrb[0].mxu0 %v180
    %v384 = vpop.f32.mrb[0].mxu0
    %v385 = vadd.f32 0.0, %v384
    %v386 = vpop.f32.mrb[0].mxu0
    %387 = vmatprep.mubr.f32.mxu0 0.0
    %388 = vmatmul.mubr.f32.gmra.mrb[0].mxu0 %v183
    %v389 = vpop.f32.mrb[0].mxu0
    %v390 = vadd.f32 0.0, %v389
    %v391 = vpop.f32.mrb[0].mxu0
    %392 = vmatprep.mubr.f32.mxu0 0.0
    %393 = vmatmul.mubr.f32.gmra.mrb[0].mxu0 %v186
    %v394 = vpop.f32.mrb[0].mxu0
    %v395 = vadd.f32 0.0, %v394
    %v396 = vpop.f32.mrb[0].mxu0
    %397 = vmatprep.mubr.f32.mxu0 0.0
    %398 = vmatmul.mubr.f32.gmra.mrb[0].mxu0 %v189
    %v399 = vpop.f32.mrb[0].mxu0
    %v400 = vadd.f32 0.0, %v399
    %v401 = vpop.f32.mrb[0].mxu0
    %402 = vmatprep.mubr.f32.mxu0 0.0
    %403 = vmatmul.mubr.f32.gmra.mrb[0].mxu0 %v192
    %v404 = vpop.f32.mrb[0].mxu0
    %v405 = vadd.f32 0.0, %v404
    %v406 = vpop.f32.mrb[0].mxu0
    %407 = vmatprep.mubr.f32.mxu0 0.0
    %408 = vmatmul.mubr.f32.gmra.mrb[0].mxu0 %v195
    %v409 = vpop.f32.mrb[0].mxu0
    %v410 = vadd.f32 0.0, %v409
    %v411 = vpop.f32.mrb[0].mxu0
    %412 = vmatprep.mubr.f32.mxu0 0.0
    %413 = vmatmul.mubr.f32.gmra.mrb[0].mxu0 %v198
    %v414 = vpop.f32.mrb[0].mxu0
    %v415 = vadd.f32 0.0, %v414
    %v416 = vpop.f32.mrb[0].mxu0
    %417 = vdwg.mxu0
    %v418 = vld [vmem:[%s3] sm:$0xff]
    %v419 = vld [vmem:[%s3 + $0x8] sm:$0xff]
    %v420 = vld [vmem:[%s3 + $0x10] sm:$0xff]
    %v421 = vld [vmem:[%s3 + $0x18] sm:$0xff]
    %v423 = vsel %vm45, %v380, 0
    %v426 = vsel %vm45, %v385, 0
    %v429 = vsel %vm45, %v390, 0
    %v432 = vsel %vm45, %v395, 0
    %v435 = vsel %vm45, %v400, 0
    %v438 = vsel %vm45, %v405, 0
    %v441 = vsel %vm45, %v410, 0
    %v444 = vsel %vm45, %v415, 0
    %446 = vmatprep.subr.mxu0 0.0
    %447 = vmatpush1.msra.mxu0 %v418
    %448 = vmatprep.subr.mxu0 0.0
    %449 = vmatpush1.msra.mxu0 %v419
    %450 = vmatprep.subr.mxu0 0.0
    %451 = vmatpush1.msra.mxu0 %v420
    %452 = vmatprep.subr.mxu0 0.0
    %453 = vmatpush1.msra.mxu0 %v421
    %454 = vmatprep.subr.mxu0 0.0
    %455 = vmatpush1.msra.mxu0 0.0
    %456 = vmatprep.subr.mxu0 0.0
    %457 = vmatpush1.msra.mxu0 0.0
    %458 = vmatprep.subr.mxu0 0.0
    %459 = vmatpush1.msra.mxu0 0.0
    %460 = vmatprep.subr.mxu0 0.0
    %461 = vmatpush1.msra.mxu0 0.0
    %462 = vmatprep.subr.mxu0 0.0
    %463 = vmatpush1.msra.mxu0 0.0
    %464 = vmatprep.subr.mxu0 0.0
    %465 = vmatpush1.msra.mxu0 0.0
    %466 = vmatprep.subr.mxu0 0.0
    %467 = vmatpush1.msra.mxu0 0.0
    %468 = vmatprep.subr.mxu0 0.0
    %469 = vmatpush1.msra.mxu0 0.0
    %470 = vmatprep.subr.mxu0 0.0
    %471 = vmatpush1.msra.mxu0 0.0
    %472 = vmatprep.subr.mxu0 0.0
    %473 = vmatpush1.msra.mxu0 0.0
    %474 = vmatprep.subr.mxu0 0.0
    %475 = vmatpush1.msra.mxu0 0.0
    %476 = vmatprep.subr.mxu0 0.0
    %477 = vmatpush1.msra.mxu0 0.0
    %478 = vmatprep.subr.mxu0 0.0
    %479 = vmatpush1.msra.mxu0 0.0
    %480 = vmatprep.subr.mxu0 0.0
    %481 = vmatpush1.msra.mxu0 0.0
    %482 = vmatprep.subr.mxu0 0.0
    %483 = vmatpush1.msra.mxu0 0.0
    %484 = vmatprep.subr.mxu0 0.0
    %485 = vmatpush1.msra.mxu0 0.0
    %486 = vmatprep.subr.mxu0 0.0
    %487 = vmatpush1.msra.mxu0 0.0
    %488 = vmatprep.subr.mxu0 0.0
    %489 = vmatpush1.msra.mxu0 0.0
    %490 = vmatprep.subr.mxu0 0.0
    %491 = vmatpush1.msra.mxu0 0.0
    %492 = vmatprep.subr.mxu0 0.0
    %493 = vmatpush1.msra.mxu0 0.0
    %494 = vmatprep.subr.mxu0 0.0
    %495 = vmatpush1.msra.mxu0 0.0
    %496 = vmatprep.subr.mxu0 0.0
    %497 = vmatpush1.msra.mxu0 0.0
    %498 = vmatprep.subr.mxu0 0.0
    %499 = vmatpush1.msra.mxu0 0.0
    %500 = vmatprep.subr.mxu0 0.0
    %501 = vmatpush1.msra.mxu0 0.0
    %502 = vmatprep.subr.mxu0 0.0
    %503 = vmatpush1.msra.mxu0 0.0
    %504 = vmatprep.subr.mxu0 0.0
    %505 = vmatpush1.msra.mxu0 0.0
    %506 = vmatprep.subr.mxu0 0.0
    %507 = vmatpush1.msra.mxu0 0.0
    %508 = vmatprep.subr.mxu0 0.0
    %509 = vmatpush1.msra.mxu0 0.0
    %510 = vmatprep.mubr.f32.mxu0 0.0
    %511 = vmatmul.mubr.f32.gmra.mrb[0].mxu0 %v423
    %v512 = vpop.f32.mrb[0].mxu0
    %v513 = vadd.f32 0.0, %v512
    %v514 = vpop.f32.mrb[0].mxu0
    %515 = vmatprep.mubr.f32.mxu0 0.0
    %516 = vmatmul.mubr.f32.gmra.mrb[0].mxu0 %v426
    %v517 = vpop.f32.mrb[0].mxu0
    %v518 = vadd.f32 0.0, %v517
    %v519 = vpop.f32.mrb[0].mxu0
    %520 = vmatprep.mubr.f32.mxu0 0.0
    %521 = vmatmul.mubr.f32.gmra.mrb[0].mxu0 %v429
    %v522 = vpop.f32.mrb[0].mxu0
    %v523 = vadd.f32 0.0, %v522
    %v524 = vpop.f32.mrb[0].mxu0
    %525 = vmatprep.mubr.f32.mxu0 0.0
    %526 = vmatmul.mubr.f32.gmra.mrb[0].mxu0 %v432
    %v527 = vpop.f32.mrb[0].mxu0
    %v528 = vadd.f32 0.0, %v527
    %v529 = vpop.f32.mrb[0].mxu0
    %530 = vmatprep.mubr.f32.mxu0 0.0
    %531 = vmatmul.mubr.f32.gmra.mrb[0].mxu0 %v435
    %v532 = vpop.f32.mrb[0].mxu0
    %v533 = vadd.f32 0.0, %v532
    %v534 = vpop.f32.mrb[0].mxu0
    %535 = vmatprep.mubr.f32.mxu0 0.0
    %536 = vmatmul.mubr.f32.gmra.mrb[0].mxu0 %v438
    %v537 = vpop.f32.mrb[0].mxu0
    %v538 = vadd.f32 0.0, %v537
    %v539 = vpop.f32.mrb[0].mxu0
    %540 = vmatprep.mubr.f32.mxu0 0.0
    %541 = vmatmul.mubr.f32.gmra.mrb[0].mxu0 %v441
    %v542 = vpop.f32.mrb[0].mxu0
    %v543 = vadd.f32 0.0, %v542
    %v544 = vpop.f32.mrb[0].mxu0
    %545 = vmatprep.mubr.f32.mxu0 0.0
    %546 = vmatmul.mubr.f32.gmra.mrb[0].mxu0 %v444
    %v547 = vpop.f32.mrb[0].mxu0
    %v548 = vadd.f32 0.0, %v547
    %v549 = vpop.f32.mrb[0].mxu0
    %550 = vdwg.mxu0
    %vm551 = vcmask 195712
    %v552 = vsel %vm551, %v513, -inf
    %553 = vmax.xlane.f32.xlu0 %v552
    %v554 = vpop.xlane.xlu0 %553
    %v555 = vsel %vm551, %v518, -inf
    %556 = vmax.xlane.f32.xlu0 %v555
    %v557 = vpop.xlane.xlu0 %556
    %v558 = vsel %vm551, %v523, -inf
    %559 = vmax.xlane.f32.xlu0 %v558
    %v560 = vpop.xlane.xlu0 %559
    %v561 = vsel %vm551, %v528, -inf
    %562 = vmax.xlane.f32.xlu0 %v561
    %v563 = vpop.xlane.xlu0 %562
    %v564 = vsel %vm551, %v533, -inf
    %565 = vmax.xlane.f32.xlu0 %v564
    %v566 = vpop.xlane.xlu0 %565
    %v567 = vsel %vm551, %v538, -inf
    %568 = vmax.xlane.f32.xlu0 %v567
    %v569 = vpop.xlane.xlu0 %568
    %v570 = vsel %vm551, %v543, -inf
    %571 = vmax.xlane.f32.xlu0 %v570
    %v572 = vpop.xlane.xlu0 %571
    %v573 = vsel %vm551, %v548, -inf
    %574 = vmax.xlane.f32.xlu0 %v573
    %v575 = vpop.xlane.xlu0 %574
    %v576 = vsub.f32 %v513, %v554
    %v577 = vsub.f32 %v518, %v557
    %v578 = vsub.f32 %v523, %v560
    %v579 = vsub.f32 %v528, %v563
    %v580 = vsub.f32 %v533, %v566
    %v581 = vsub.f32 %v538, %v569
    %v582 = vsub.f32 %v543, %v572
    %v583 = vsub.f32 %v548, %v575
    %v584 = vmul.f32 %v576, 1.442695
    %v585 = vpow.pop %v584
    %v586 = vmul.f32 %v577, 1.442695
    %v587 = vpow.pop %v586
    %v588 = vmul.f32 %v578, 1.442695
    %v589 = vpow.pop %v588
    %v590 = vmul.f32 %v579, 1.442695
    %v591 = vpow.pop %v590
    %v592 = vmul.f32 %v580, 1.442695
    %v593 = vpow.pop %v592
    %v594 = vmul.f32 %v581, 1.442695
    %v595 = vpow.pop %v594
    %v596 = vmul.f32 %v582, 1.442695
    %v597 = vpow.pop %v596
    %v598 = vmul.f32 %v583, 1.442695
    %v599 = vpow.pop %v598
    %608 = vrot.lane.b32.xlu0 %v585, 112
    %v609 = vpop.permute.xlu0 %608
    %610 = vrot.lane.b32.xlu0 %v587, 112
    %v611 = vpop.permute.xlu0 %610
    %612 = vrot.lane.b32.xlu0 %v589, 112
    %v613 = vpop.permute.xlu0 %612
    %614 = vrot.lane.b32.xlu0 %v591, 112
    %v615 = vpop.permute.xlu0 %614
    %616 = vrot.lane.b32.xlu0 %v593, 112
    %v617 = vpop.permute.xlu0 %616
    %618 = vrot.lane.b32.xlu0 %v595, 112
    %v619 = vpop.permute.xlu0 %618
    %620 = vrot.lane.b32.xlu0 %v597, 112
    %v621 = vpop.permute.xlu0 %620
    %622 = vrot.lane.b32.xlu0 %v599, 112
    %v623 = vpop.permute.xlu0 %622
    %vm632 = vcmask 64512
    %v633 = vsel %vm632, %v609, 0.0
    %634 = vadd.xlane.f32.xlu0 %v633
    %v635 = vpop.xlane.xlu0 %634
    %v636 = vsel %vm632, %v611, 0.0
    %637 = vadd.xlane.f32.xlu0 %v636
    %v638 = vpop.xlane.xlu0 %637
    %v639 = vsel %vm632, %v613, 0.0
    %640 = vadd.xlane.f32.xlu0 %v639
    %v641 = vpop.xlane.xlu0 %640
    %v642 = vsel %vm632, %v615, 0.0
    %643 = vadd.xlane.f32.xlu0 %v642
    %v644 = vpop.xlane.xlu0 %643
    %v645 = vsel %vm632, %v617, 0.0
    %646 = vadd.xlane.f32.xlu0 %v645
    %v647 = vpop.xlane.xlu0 %646
    %v648 = vsel %vm632, %v619, 0.0
    %649 = vadd.xlane.f32.xlu0 %v648
    %v650 = vpop.xlane.xlu0 %649
    %v651 = vsel %vm632, %v621, 0.0
    %652 = vadd.xlane.f32.xlu0 %v651
    %v653 = vpop.xlane.xlu0 %652
    %v654 = vsel %vm632, %v623, 0.0
    %655 = vadd.xlane.f32.xlu0 %v654
    %v656 = vpop.xlane.xlu0 %655
    %v657 = vrcp.pop %v635
    %v658 = vrcp.pop %v638
    %v659 = vrcp.pop %v641
    %v660 = vrcp.pop %v644
    %v661 = vrcp.pop %v647
    %v662 = vrcp.pop %v650
    %v663 = vrcp.pop %v653
    %v664 = vrcp.pop %v656
    %v665 = vmul.f32 %v585, %v657
    %v666 = vmul.f32 %v587, %v658
    %v667 = vmul.f32 %v589, %v659
    %v668 = vmul.f32 %v591, %v660
    %v669 = vmul.f32 %v593, %v661
    %v670 = vmul.f32 %v595, %v662
    %v671 = vmul.f32 %v597, %v663
    %v672 = vmul.f32 %v599, %v664
    %681 = vrot.lane.b32.xlu0 %v665, 112
    %v682 = vpop.permute.xlu0 %681
    %683 = vrot.lane.b32.xlu0 %v666, 112
    %v684 = vpop.permute.xlu0 %683
    %685 = vrot.lane.b32.xlu0 %v667, 112
    %v686 = vpop.permute.xlu0 %685
    %687 = vrot.lane.b32.xlu0 %v668, 112
    %v688 = vpop.permute.xlu0 %687
    %689 = vrot.lane.b32.xlu0 %v669, 112
    %v690 = vpop.permute.xlu0 %689
    %691 = vrot.lane.b32.xlu0 %v670, 112
    %v692 = vpop.permute.xlu0 %691
    %693 = vrot.lane.b32.xlu0 %v671, 112
    %v694 = vpop.permute.xlu0 %693
    %695 = vrot.lane.b32.xlu0 %v672, 112
    %v696 = vpop.permute.xlu0 %695
    %v697 = vsel %vm632, %v682, 0
    %v699 = vsel %vm632, %v684, 0
    %v701 = vsel %vm632, %v686, 0
    %v703 = vsel %vm632, %v688, 0
    %v705 = vsel %vm632, %v690, 0
    %v707 = vsel %vm632, %v692, 0
    %v709 = vsel %vm632, %v694, 0
    %v711 = vsel %vm632, %v696, 0
    %713 = vmatprep.subr.mxu0 0.0
    %714 = vmatpush1.xpose.msra.mxu0 %v697
    %715 = vmatprep.subr.mxu0 0.0
    %716 = vmatpush1.xpose.msra.mxu0 %v699
    %717 = vmatprep.subr.mxu0 0.0
    %718 = vmatpush1.xpose.msra.mxu0 %v701
    %719 = vmatprep.subr.mxu0 0.0
    %720 = vmatpush1.xpose.msra.mxu0 %v703
    %721 = vmatprep.subr.mxu0 0.0
    %722 = vmatpush1.xpose.msra.mxu0 %v705
    %723 = vmatprep.subr.mxu0 0.0
    %724 = vmatpush1.xpose.msra.mxu0 %v707
    %725 = vmatprep.subr.mxu0 0.0
    %726 = vmatpush1.xpose.msra.mxu0 %v709
    %727 = vmatprep.subr.mxu0 0.0
    %728 = vmatpush1.xpose.msra.mxu0 %v711
    %729 = vmatprep.subr.mxu0 0.0
    %730 = vmatpush1.xpose.msra.mxu0 0.0
    %731 = vmatprep.subr.mxu0 0.0
    %732 = vmatpush1.xpose.msra.mxu0 0.0
    %733 = vmatprep.subr.mxu0 0.0
    %734 = vmatpush1.xpose.msra.mxu0 0.0
    %735 = vmatprep.subr.mxu0 0.0
    %736 = vmatpush1.xpose.msra.mxu0 0.0
    %737 = vmatprep.subr.mxu0 0.0
    %738 = vmatpush1.xpose.msra.mxu0 0.0
    %739 = vmatprep.subr.mxu0 0.0
    %740 = vmatpush1.xpose.msra.mxu0 0.0
    %741 = vmatprep.subr.mxu0 0.0
    %742 = vmatpush1.xpose.msra.mxu0 0.0
    %743 = vmatprep.subr.mxu0 0.0
    %744 = vmatpush1.xpose.msra.mxu0 0.0
    %745 = vmatprep.subr.mxu0 0.0
    %746 = vmatpush1.xpose.msra.mxu0 0.0
    %747 = vmatprep.subr.mxu0 0.0
    %748 = vmatpush1.xpose.msra.mxu0 0.0
    %749 = vmatprep.subr.mxu0 0.0
    %750 = vmatpush1.xpose.msra.mxu0 0.0
    %751 = vmatprep.subr.mxu0 0.0
    %752 = vmatpush1.xpose.msra.mxu0 0.0
    %753 = vmatprep.subr.mxu0 0.0
    %754 = vmatpush1.xpose.msra.mxu0 0.0
    %755 = vmatprep.subr.mxu0 0.0
    %756 = vmatpush1.xpose.msra.mxu0 0.0
    %757 = vmatprep.subr.mxu0 0.0
    %758 = vmatpush1.xpose.msra.mxu0 0.0
    %759 = vmatprep.subr.mxu0 0.0
    %760 = vmatpush1.xpose.msra.mxu0 0.0
    %761 = vmatprep.subr.mxu0 0.0
    %762 = vmatpush1.xpose.msra.mxu0 0.0
    %763 = vmatprep.subr.mxu0 0.0
    %764 = vmatpush1.xpose.msra.mxu0 0.0
    %765 = vmatprep.subr.mxu0 0.0
    %766 = vmatpush1.xpose.msra.mxu0 0.0
    %767 = vmatprep.subr.mxu0 0.0
    %768 = vmatpush1.xpose.msra.mxu0 0.0
    %769 = vmatprep.subr.mxu0 0.0
    %770 = vmatpush1.xpose.msra.mxu0 0.0
    %771 = vmatprep.subr.mxu0 0.0
    %772 = vmatpush1.xpose.msra.mxu0 0.0
    %773 = vmatprep.subr.mxu0 0.0
    %774 = vmatpush1.xpose.msra.mxu0 0.0
    %775 = vmatprep.subr.mxu0 0.0
    %776 = vmatpush1.xpose.msra.mxu0 0.0
    %777 = vmatprep.mubr.f32.mxu0 0.0
    %778 = vmatmul.mubr.f32.gmra.mrb[0].mxu0 %v697
    %v779 = vpop.f32.mrb[0].mxu0
    %v780 = vadd.f32 0.0, %v779
    %v781 = vpop.f32.mrb[0].mxu0
    %782 = vmatprep.mubr.f32.mxu0 0.0
    %783 = vmatmul.mubr.f32.gmra.mrb[0].mxu0 %v699
    %v784 = vpop.f32.mrb[0].mxu0
    %v785 = vadd.f32 0.0, %v784
    %v786 = vpop.f32.mrb[0].mxu0
    %787 = vmatprep.mubr.f32.mxu0 0.0
    %788 = vmatmul.mubr.f32.gmra.mrb[0].mxu0 %v701
    %v789 = vpop.f32.mrb[0].mxu0
    %v790 = vadd.f32 0.0, %v789
    %v791 = vpop.f32.mrb[0].mxu0
    %792 = vmatprep.mubr.f32.mxu0 0.0
    %793 = vmatmul.mubr.f32.gmra.mrb[0].mxu0 %v703
    %v794 = vpop.f32.mrb[0].mxu0
    %v795 = vadd.f32 0.0, %v794
    %v796 = vpop.f32.mrb[0].mxu0
    %797 = vmatprep.mubr.f32.mxu0 0.0
    %798 = vmatmul.mubr.f32.gmra.mrb[0].mxu0 %v705
    %v799 = vpop.f32.mrb[0].mxu0
    %v800 = vadd.f32 0.0, %v799
    %v801 = vpop.f32.mrb[0].mxu0
    %802 = vmatprep.mubr.f32.mxu0 0.0
    %803 = vmatmul.mubr.f32.gmra.mrb[0].mxu0 %v707
    %v804 = vpop.f32.mrb[0].mxu0
    %v805 = vadd.f32 0.0, %v804
    %v806 = vpop.f32.mrb[0].mxu0
    %807 = vmatprep.mubr.f32.mxu0 0.0
    %808 = vmatmul.mubr.f32.gmra.mrb[0].mxu0 %v709
    %v809 = vpop.f32.mrb[0].mxu0
    %v810 = vadd.f32 0.0, %v809
    %v811 = vpop.f32.mrb[0].mxu0
    %812 = vmatprep.mubr.f32.mxu0 0.0
    %813 = vmatmul.mubr.f32.gmra.mrb[0].mxu0 %v711
    %v814 = vpop.f32.mrb[0].mxu0
    %v815 = vadd.f32 0.0, %v814
    %v816 = vpop.f32.mrb[0].mxu0
    %817 = vdwg.mxu0
    %v818 = vld [vmem:[%s4] sm:$0xff]
    %v819 = vld [vmem:[%s4 + $0x8] sm:$0xff]
    %vm820 = vcmask 130048
    %v822 = vsel %vm820, %v513, 0
    %v825 = vsel %vm820, %v518, 0
    %v828 = vsel %vm820, %v523, 0
    %v831 = vsel %vm820, %v528, 0
    %v834 = vsel %vm820, %v533, 0
    %v837 = vsel %vm820, %v538, 0
    %v840 = vsel %vm820, %v543, 0
    %v843 = vsel %vm820, %v548, 0
    %845 = vmatprep.subr.mxu0 0.0
    %846 = vmatpush1.msra.mxu0 %v818
    %847 = vmatprep.subr.mxu0 0.0
    %848 = vmatpush1.msra.mxu0 %v819
    %849 = vmatprep.subr.mxu0 0.0
    %850 = vmatpush1.msra.mxu0 0.0
    %851 = vmatprep.subr.mxu0 0.0
    %852 = vmatpush1.msra.mxu0 0.0
    %853 = vmatprep.subr.mxu0 0.0
    %854 = vmatpush1.msra.mxu0 0.0
    %855 = vmatprep.subr.mxu0 0.0
    %856 = vmatpush1.msra.mxu0 0.0
    %857 = vmatprep.subr.mxu0 0.0
    %858 = vmatpush1.msra.mxu0 0.0
    %859 = vmatprep.subr.mxu0 0.0
    %860 = vmatpush1.msra.mxu0 0.0
    %861 = vmatprep.subr.mxu0 0.0
    %862 = vmatpush1.msra.mxu0 0.0
    %863 = vmatprep.subr.mxu0 0.0
    %864 = vmatpush1.msra.mxu0 0.0
    %865 = vmatprep.subr.mxu0 0.0
    %866 = vmatpush1.msra.mxu0 0.0
    %867 = vmatprep.subr.mxu0 0.0
    %868 = vmatpush1.msra.mxu0 0.0
    %869 = vmatprep.subr.mxu0 0.0
    %870 = vmatpush1.msra.mxu0 0.0
    %871 = vmatprep.subr.mxu0 0.0
    %872 = vmatpush1.msra.mxu0 0.0
    %873 = vmatprep.subr.mxu0 0.0
    %874 = vmatpush1.msra.mxu0 0.0
    %875 = vmatprep.subr.mxu0 0.0
    %876 = vmatpush1.msra.mxu0 0.0
    %877 = vmatprep.subr.mxu0 0.0
    %878 = vmatpush1.msra.mxu0 0.0
    %879 = vmatprep.subr.mxu0 0.0
    %880 = vmatpush1.msra.mxu0 0.0
    %881 = vmatprep.subr.mxu0 0.0
    %882 = vmatpush1.msra.mxu0 0.0
    %883 = vmatprep.subr.mxu0 0.0
    %884 = vmatpush1.msra.mxu0 0.0
    %885 = vmatprep.subr.mxu0 0.0
    %886 = vmatpush1.msra.mxu0 0.0
    %887 = vmatprep.subr.mxu0 0.0
    %888 = vmatpush1.msra.mxu0 0.0
    %889 = vmatprep.subr.mxu0 0.0
    %890 = vmatpush1.msra.mxu0 0.0
    %891 = vmatprep.subr.mxu0 0.0
    %892 = vmatpush1.msra.mxu0 0.0
    %893 = vmatprep.subr.mxu0 0.0
    %894 = vmatpush1.msra.mxu0 0.0
    %895 = vmatprep.subr.mxu0 0.0
    %896 = vmatpush1.msra.mxu0 0.0
    %897 = vmatprep.subr.mxu0 0.0
    %898 = vmatpush1.msra.mxu0 0.0
    %899 = vmatprep.subr.mxu0 0.0
    %900 = vmatpush1.msra.mxu0 0.0
    %901 = vmatprep.subr.mxu0 0.0
    %902 = vmatpush1.msra.mxu0 0.0
    %903 = vmatprep.subr.mxu0 0.0
    %904 = vmatpush1.msra.mxu0 0.0
    %905 = vmatprep.subr.mxu0 0.0
    %906 = vmatpush1.msra.mxu0 0.0
    %907 = vmatprep.subr.mxu0 0.0
    %908 = vmatpush1.msra.mxu0 0.0
    %909 = vmatprep.mubr.f32.mxu0 0.0
    %910 = vmatmul.mubr.f32.gmra.mrb[0].mxu0 %v822
    %v911 = vpop.f32.mrb[0].mxu0
    %v912 = vadd.f32 0.0, %v911
    %v913 = vpop.f32.mrb[0].mxu0
    %914 = vmatprep.mubr.f32.mxu0 0.0
    %915 = vmatmul.mubr.f32.gmra.mrb[0].mxu0 %v825
    %v916 = vpop.f32.mrb[0].mxu0
    %v917 = vadd.f32 0.0, %v916
    %v918 = vpop.f32.mrb[0].mxu0
    %919 = vmatprep.mubr.f32.mxu0 0.0
    %920 = vmatmul.mubr.f32.gmra.mrb[0].mxu0 %v828
    %v921 = vpop.f32.mrb[0].mxu0
    %v922 = vadd.f32 0.0, %v921
    %v923 = vpop.f32.mrb[0].mxu0
    %924 = vmatprep.mubr.f32.mxu0 0.0
    %925 = vmatmul.mubr.f32.gmra.mrb[0].mxu0 %v831
    %v926 = vpop.f32.mrb[0].mxu0
    %v927 = vadd.f32 0.0, %v926
    %v928 = vpop.f32.mrb[0].mxu0
    %929 = vmatprep.mubr.f32.mxu0 0.0
    %930 = vmatmul.mubr.f32.gmra.mrb[0].mxu0 %v834
    %v931 = vpop.f32.mrb[0].mxu0
    %v932 = vadd.f32 0.0, %v931
    %v933 = vpop.f32.mrb[0].mxu0
    %934 = vmatprep.mubr.f32.mxu0 0.0
    %935 = vmatmul.mubr.f32.gmra.mrb[0].mxu0 %v837
    %v936 = vpop.f32.mrb[0].mxu0
    %v937 = vadd.f32 0.0, %v936
    %v938 = vpop.f32.mrb[0].mxu0
    %939 = vmatprep.mubr.f32.mxu0 0.0
    %940 = vmatmul.mubr.f32.gmra.mrb[0].mxu0 %v840
    %v941 = vpop.f32.mrb[0].mxu0
    %v942 = vadd.f32 0.0, %v941
    %v943 = vpop.f32.mrb[0].mxu0
    %944 = vmatprep.mubr.f32.mxu0 0.0
    %945 = vmatmul.mubr.f32.gmra.mrb[0].mxu0 %v843
    %v946 = vpop.f32.mrb[0].mxu0
    %v947 = vadd.f32 0.0, %v946
    %v948 = vpop.f32.mrb[0].mxu0
    %949 = vdwg.mxu0
    %950 = vmatprep.subr.mxu0 0.0
    %951 = vmatpush1.msra.mxu0 %v912
    %952 = vmatprep.subr.mxu0 0.0
    %953 = vmatpush1.msra.mxu0 %v917
    %954 = vmatprep.subr.mxu0 0.0
    %955 = vmatpush1.msra.mxu0 %v922
    %956 = vmatprep.subr.mxu0 0.0
    %957 = vmatpush1.msra.mxu0 %v927
    %958 = vmatprep.subr.mxu0 0.0
    %959 = vmatpush1.msra.mxu0 %v932
    %960 = vmatprep.subr.mxu0 0.0
    %961 = vmatpush1.msra.mxu0 %v937
    %962 = vmatprep.subr.mxu0 0.0
    %963 = vmatpush1.msra.mxu0 %v942
    %964 = vmatprep.subr.mxu0 0.0
    %965 = vmatpush1.msra.mxu0 %v947
    %966 = vmatprep.subr.mxu0 0.0
    %967 = vmatpush1.msra.mxu0 0.0
    %968 = vmatprep.subr.mxu0 0.0
    %969 = vmatpush1.msra.mxu0 0.0
    %970 = vmatprep.subr.mxu0 0.0
    %971 = vmatpush1.msra.mxu0 0.0
    %972 = vmatprep.subr.mxu0 0.0
    %973 = vmatpush1.msra.mxu0 0.0
    %974 = vmatprep.subr.mxu0 0.0
    %975 = vmatpush1.msra.mxu0 0.0
    %976 = vmatprep.subr.mxu0 0.0
    %977 = vmatpush1.msra.mxu0 0.0
    %978 = vmatprep.subr.mxu0 0.0
    %979 = vmatpush1.msra.mxu0 0.0
    %980 = vmatprep.subr.mxu0 0.0
    %981 = vmatpush1.msra.mxu0 0.0
    %982 = vmatprep.subr.mxu0 0.0
    %983 = vmatpush1.msra.mxu0 0.0
    %984 = vmatprep.subr.mxu0 0.0
    %985 = vmatpush1.msra.mxu0 0.0
    %986 = vmatprep.subr.mxu0 0.0
    %987 = vmatpush1.msra.mxu0 0.0
    %988 = vmatprep.subr.mxu0 0.0
    %989 = vmatpush1.msra.mxu0 0.0
    %990 = vmatprep.subr.mxu0 0.0
    %991 = vmatpush1.msra.mxu0 0.0
    %992 = vmatprep.subr.mxu0 0.0
    %993 = vmatpush1.msra.mxu0 0.0
    %994 = vmatprep.subr.mxu0 0.0
    %995 = vmatpush1.msra.mxu0 0.0
    %996 = vmatprep.subr.mxu0 0.0
    %997 = vmatpush1.msra.mxu0 0.0
    %998 = vmatprep.subr.mxu0 0.0
    %999 = vmatpush1.msra.mxu0 0.0
    %1000 = vmatprep.subr.mxu0 0.0
    %1001 = vmatpush1.msra.mxu0 0.0
    %1002 = vmatprep.subr.mxu0 0.0
    %1003 = vmatpush1.msra.mxu0 0.0
    %1004 = vmatprep.subr.mxu0 0.0
    %1005 = vmatpush1.msra.mxu0 0.0
    %1006 = vmatprep.subr.mxu0 0.0
    %1007 = vmatpush1.msra.mxu0 0.0
    %1008 = vmatprep.subr.mxu0 0.0
    %1009 = vmatpush1.msra.mxu0 0.0
    %1010 = vmatprep.subr.mxu0 0.0
    %1011 = vmatpush1.msra.mxu0 0.0
    %1012 = vmatprep.subr.mxu0 0.0
    %1013 = vmatpush1.msra.mxu0 0.0
    %1014 = vmatprep.mubr.f32.mxu0 0.0
    %1015 = vmatmul.mubr.f32.gmra.mrb[0].mxu0 %v177
    %v1016 = vpop.f32.mrb[0].mxu0
    %v1017 = vadd.f32 0.0, %v1016
    %v1018 = vpop.f32.mrb[0].mxu0
    %1019 = vmatprep.mubr.f32.mxu0 0.0
    %1020 = vmatmul.mubr.f32.gmra.mrb[0].mxu0 %v180
    %v1021 = vpop.f32.mrb[0].mxu0
    %v1022 = vadd.f32 0.0, %v1021
    %v1023 = vpop.f32.mrb[0].mxu0
    %1024 = vmatprep.mubr.f32.mxu0 0.0
    %1025 = vmatmul.mubr.f32.gmra.mrb[0].mxu0 %v183
    %v1026 = vpop.f32.mrb[0].mxu0
    %v1027 = vadd.f32 0.0, %v1026
    %v1028 = vpop.f32.mrb[0].mxu0
    %1029 = vmatprep.mubr.f32.mxu0 0.0
    %1030 = vmatmul.mubr.f32.gmra.mrb[0].mxu0 %v186
    %v1031 = vpop.f32.mrb[0].mxu0
    %v1032 = vadd.f32 0.0, %v1031
    %v1033 = vpop.f32.mrb[0].mxu0
    %1034 = vmatprep.mubr.f32.mxu0 0.0
    %1035 = vmatmul.mubr.f32.gmra.mrb[0].mxu0 %v189
    %v1036 = vpop.f32.mrb[0].mxu0
    %v1037 = vadd.f32 0.0, %v1036
    %v1038 = vpop.f32.mrb[0].mxu0
    %1039 = vmatprep.mubr.f32.mxu0 0.0
    %1040 = vmatmul.mubr.f32.gmra.mrb[0].mxu0 %v192
    %v1041 = vpop.f32.mrb[0].mxu0
    %v1042 = vadd.f32 0.0, %v1041
    %v1043 = vpop.f32.mrb[0].mxu0
    %1044 = vmatprep.mubr.f32.mxu0 0.0
    %1045 = vmatmul.mubr.f32.gmra.mrb[0].mxu0 %v195
    %v1046 = vpop.f32.mrb[0].mxu0
    %v1047 = vadd.f32 0.0, %v1046
    %v1048 = vpop.f32.mrb[0].mxu0
    %1049 = vmatprep.mubr.f32.mxu0 0.0
    %1050 = vmatmul.mubr.f32.gmra.mrb[0].mxu0 %v198
    %v1051 = vpop.f32.mrb[0].mxu0
    %v1052 = vadd.f32 0.0, %v1051
    %v1053 = vpop.f32.mrb[0].mxu0
    %1054 = vdwg.mxu0
    %v1055 = vmax.f32 %v1017, 0.0
    %v1056 = vmax.f32 %v1022, 0.0
    %v1057 = vmax.f32 %v1027, 0.0
    %v1058 = vmax.f32 %v1032, 0.0
    %v1059 = vmax.f32 %v1037, 0.0
    %v1060 = vmax.f32 %v1042, 0.0
    %v1061 = vmax.f32 %v1047, 0.0
    %v1062 = vmax.f32 %v1052, 0.0
    %1063 = vmatprep.subr.mxu0 0.0
    %1064 = vmatpush1.xpose.msra.mxu0 %v822
    %1065 = vmatprep.subr.mxu0 0.0
    %1066 = vmatpush1.xpose.msra.mxu0 %v825
    %1067 = vmatprep.subr.mxu0 0.0
    %1068 = vmatpush1.xpose.msra.mxu0 %v828
    %1069 = vmatprep.subr.mxu0 0.0
    %1070 = vmatpush1.xpose.msra.mxu0 %v831
    %1071 = vmatprep.subr.mxu0 0.0
    %1072 = vmatpush1.xpose.msra.mxu0 %v834
    %1073 = vmatprep.subr.mxu0 0.0
    %1074 = vmatpush1.xpose.msra.mxu0 %v837
    %1075 = vmatprep.subr.mxu0 0.0
    %1076 = vmatpush1.xpose.msra.mxu0 %v840
    %1077 = vmatprep.subr.mxu0 0.0
    %1078 = vmatpush1.xpose.msra.mxu0 %v843
    %1079 = vmatprep.subr.mxu0 0.0
    %1080 = vmatpush1.xpose.msra.mxu0 0.0
    %1081 = vmatprep.subr.mxu0 0.0
    %1082 = vmatpush1.xpose.msra.mxu0 0.0
    %1083 = vmatprep.subr.mxu0 0.0
    %1084 = vmatpush1.xpose.msra.mxu0 0.0
    %1085 = vmatprep.subr.mxu0 0.0
    %1086 = vmatpush1.xpose.msra.mxu0 0.0
    %1087 = vmatprep.subr.mxu0 0.0
    %1088 = vmatpush1.xpose.msra.mxu0 0.0
    %1089 = vmatprep.subr.mxu0 0.0
    %1090 = vmatpush1.xpose.msra.mxu0 0.0
    %1091 = vmatprep.subr.mxu0 0.0
    %1092 = vmatpush1.xpose.msra.mxu0 0.0
    %1093 = vmatprep.subr.mxu0 0.0
    %1094 = vmatpush1.xpose.msra.mxu0 0.0
    %1095 = vmatprep.subr.mxu0 0.0
    %1096 = vmatpush1.xpose.msra.mxu0 0.0
    %1097 = vmatprep.subr.mxu0 0.0
    %1098 = vmatpush1.xpose.msra.mxu0 0.0
    %1099 = vmatprep.subr.mxu0 0.0
    %1100 = vmatpush1.xpose.msra.mxu0 0.0
    %1101 = vmatprep.subr.mxu0 0.0
    %1102 = vmatpush1.xpose.msra.mxu0 0.0
    %1103 = vmatprep.subr.mxu0 0.0
    %1104 = vmatpush1.xpose.msra.mxu0 0.0
    %1105 = vmatprep.subr.mxu0 0.0
    %1106 = vmatpush1.xpose.msra.mxu0 0.0
    %1107 = vmatprep.subr.mxu0 0.0
    %1108 = vmatpush1.xpose.msra.mxu0 0.0
    %1109 = vmatprep.subr.mxu0 0.0
    %1110 = vmatpush1.xpose.msra.mxu0 0.0
    %1111 = vmatprep.subr.mxu0 0.0
    %1112 = vmatpush1.xpose.msra.mxu0 0.0
    %1113 = vmatprep.subr.mxu0 0.0
    %1114 = vmatpush1.xpose.msra.mxu0 0.0
    %1115 = vmatprep.subr.mxu0 0.0
    %1116 = vmatpush1.xpose.msra.mxu0 0.0
    %1117 = vmatprep.subr.mxu0 0.0
    %1118 = vmatpush1.xpose.msra.mxu0 0.0
    %1119 = vmatprep.subr.mxu0 0.0
    %1120 = vmatpush1.xpose.msra.mxu0 0.0
    %1121 = vmatprep.subr.mxu0 0.0
    %1122 = vmatpush1.xpose.msra.mxu0 0.0
    %1123 = vmatprep.subr.mxu0 0.0
    %1124 = vmatpush1.xpose.msra.mxu0 0.0
    %1125 = vmatprep.subr.mxu0 0.0
    %1126 = vmatpush1.xpose.msra.mxu0 0.0
    %1127 = vmatprep.mubr.f32.mxu0 0.0
    %1128 = vmatmul.mubr.f32.gmra.mrb[0].mxu0 %v822
    %v1129 = vpop.f32.mrb[0].mxu0
    %v1130 = vadd.f32 0.0, %v1129
    %v1131 = vpop.f32.mrb[0].mxu0
    %1132 = vmatprep.mubr.f32.mxu0 0.0
    %1133 = vmatmul.mubr.f32.gmra.mrb[0].mxu0 %v825
    %v1134 = vpop.f32.mrb[0].mxu0
    %v1135 = vadd.f32 0.0, %v1134
    %v1136 = vpop.f32.mrb[0].mxu0
    %1137 = vmatprep.mubr.f32.mxu0 0.0
    %1138 = vmatmul.mubr.f32.gmra.mrb[0].mxu0 %v828
    %v1139 = vpop.f32.mrb[0].mxu0
    %v1140 = vadd.f32 0.0, %v1139
    %v1141 = vpop.f32.mrb[0].mxu0
    %1142 = vmatprep.mubr.f32.mxu0 0.0
    %1143 = vmatmul.mubr.f32.gmra.mrb[0].mxu0 %v831
    %v1144 = vpop.f32.mrb[0].mxu0
    %v1145 = vadd.f32 0.0, %v1144
    %v1146 = vpop.f32.mrb[0].mxu0
    %1147 = vmatprep.mubr.f32.mxu0 0.0
    %1148 = vmatmul.mubr.f32.gmra.mrb[0].mxu0 %v834
    %v1149 = vpop.f32.mrb[0].mxu0
    %v1150 = vadd.f32 0.0, %v1149
    %v1151 = vpop.f32.mrb[0].mxu0
    %1152 = vmatprep.mubr.f32.mxu0 0.0
    %1153 = vmatmul.mubr.f32.gmra.mrb[0].mxu0 %v837
    %v1154 = vpop.f32.mrb[0].mxu0
    %v1155 = vadd.f32 0.0, %v1154
    %v1156 = vpop.f32.mrb[0].mxu0
    %1157 = vmatprep.mubr.f32.mxu0 0.0
    %1158 = vmatmul.mubr.f32.gmra.mrb[0].mxu0 %v840
    %v1159 = vpop.f32.mrb[0].mxu0
    %v1160 = vadd.f32 0.0, %v1159
    %v1161 = vpop.f32.mrb[0].mxu0
    %1162 = vmatprep.mubr.f32.mxu0 0.0
    %1163 = vmatmul.mubr.f32.gmra.mrb[0].mxu0 %v843
    %v1164 = vpop.f32.mrb[0].mxu0
    %v1165 = vadd.f32 0.0, %v1164
    %v1166 = vpop.f32.mrb[0].mxu0
    %1167 = vdwg.mxu0
    %v1168 = vxor.u32 %v1130, 2147483648
    %v1169 = vxor.u32 %v1135, 2147483648
    %v1170 = vxor.u32 %v1140, 2147483648
    %v1171 = vxor.u32 %v1145, 2147483648
    %v1172 = vxor.u32 %v1150, 2147483648
    %v1173 = vxor.u32 %v1155, 2147483648
    %v1174 = vxor.u32 %v1160, 2147483648
    %v1175 = vxor.u32 %v1165, 2147483648
    %v1176 = vmul.f32 %v1168, 1.442695
    %v1177 = vpow.pop %v1176
    %v1178 = vmul.f32 %v1169, 1.442695
    %v1179 = vpow.pop %v1178
    %v1180 = vmul.f32 %v1170, 1.442695
    %v1181 = vpow.pop %v1180
    %v1182 = vmul.f32 %v1171, 1.442695
    %v1183 = vpow.pop %v1182
    %v1184 = vmul.f32 %v1172, 1.442695
    %v1185 = vpow.pop %v1184
    %v1186 = vmul.f32 %v1173, 1.442695
    %v1187 = vpow.pop %v1186
    %v1188 = vmul.f32 %v1174, 1.442695
    %v1189 = vpow.pop %v1188
    %v1190 = vmul.f32 %v1175, 1.442695
    %v1191 = vpow.pop %v1190
    %v1192 = vadd.f32 %v1177, 1.0
    %v1193 = vadd.f32 %v1179, 1.0
    %v1194 = vadd.f32 %v1181, 1.0
    %v1195 = vadd.f32 %v1183, 1.0
    %v1196 = vadd.f32 %v1185, 1.0
    %v1197 = vadd.f32 %v1187, 1.0
    %v1198 = vadd.f32 %v1189, 1.0
    %v1199 = vadd.f32 %v1191, 1.0
    %v1200 = vrcp.pop %v1192
    %v1201 = vmul.f32 1.0, %v1200
    %v1202 = vrcp.pop %v1193
    %v1203 = vmul.f32 1.0, %v1202
    %v1204 = vrcp.pop %v1194
    %v1205 = vmul.f32 1.0, %v1204
    %v1206 = vrcp.pop %v1195
    %v1207 = vmul.f32 1.0, %v1206
    %v1208 = vrcp.pop %v1196
    %v1209 = vmul.f32 1.0, %v1208
    %v1210 = vrcp.pop %v1197
    %v1211 = vmul.f32 1.0, %v1210
    %v1212 = vrcp.pop %v1198
    %v1213 = vmul.f32 1.0, %v1212
    %v1214 = vrcp.pop %v1199
    %v1215 = vmul.f32 1.0, %v1214
    %1216 = vst.msk [vmem:[#allocation2] sm:$0xff] %vm175, %v1201
    %1217 = vst.msk [vmem:[#allocation2 + $0x8] sm:$0xff] %vm175, %v1203
    %1218 = vst.msk [vmem:[#allocation2 + $0x10] sm:$0xff] %vm175, %v1205
    %1219 = vst.msk [vmem:[#allocation2 + $0x18] sm:$0xff] %vm175, %v1207
    %1220 = vst.msk [vmem:[#allocation2 + $0x20] sm:$0xff] %vm175, %v1209
    %1221 = vst.msk [vmem:[#allocation2 + $0x28] sm:$0xff] %vm175, %v1211
    %1222 = vst.msk [vmem:[#allocation2 + $0x30] sm:$0xff] %vm175, %v1213
    %1223 = vst.msk [vmem:[#allocation2 + $0x38] sm:$0xff] %vm175, %v1215
    %1224 = vst.msk [vmem:[#allocation4] sm:$0xff] %vm175, %v780
    %1225 = vst.msk [vmem:[#allocation4 + $0x8] sm:$0xff] %vm175, %v785
    %1226 = vst.msk [vmem:[#allocation4 + $0x10] sm:$0xff] %vm175, %v790
    %1227 = vst.msk [vmem:[#allocation4 + $0x18] sm:$0xff] %vm175, %v795
    %1228 = vst.msk [vmem:[#allocation4 + $0x20] sm:$0xff] %vm175, %v800
    %1229 = vst.msk [vmem:[#allocation4 + $0x28] sm:$0xff] %vm175, %v805
    %1230 = vst.msk [vmem:[#allocation4 + $0x30] sm:$0xff] %vm175, %v810
    %1231 = vst.msk [vmem:[#allocation4 + $0x38] sm:$0xff] %vm175, %v815
    %1232 = vst.msk [vmem:[%s7] sm:$0xff] %vm45, %v1055
    %1233 = vst.msk [vmem:[%s7 + $0x8] sm:$0xff] %vm45, %v1056
    %1234 = vst.msk [vmem:[%s7 + $0x10] sm:$0xff] %vm45, %v1057
    %1235 = vst.msk [vmem:[%s7 + $0x18] sm:$0xff] %vm45, %v1058
    %1236 = vst.msk [vmem:[%s7 + $0x20] sm:$0xff] %vm45, %v1059
    %1237 = vst.msk [vmem:[%s7 + $0x28] sm:$0xff] %vm45, %v1060
    %1238 = vst.msk [vmem:[%s7 + $0x30] sm:$0xff] %vm45, %v1061
    %1239 = vst.msk [vmem:[%s7 + $0x38] sm:$0xff] %vm45, %v1062
    // Predicated region
    $region22: #{tpu_custom_call.1} parent=1 // pred_check
      _
    $region23: #{tpu_custom_call.1} parent=1 // pred_check_branch
      %1241 = sbr.rel (0) target = $region25
    $region24: #{tpu_custom_call.1} parent=1 // pred_region
      %s1243 = ssub.s32 1024, 1024
      %1244 = vsyncadd [#allocation3], %s1243
      %s1245 = sshll.u32 [#allocation2], 4
      %s1246 = int_to_ptr.vmem [resolvable:$true] %s1245
      %1251 = dma.vmem_to_hbm [thread:$0]  %s1246, 1024, %s5, [#allocation3], 128, 128, 8
    $region25: #{tpu_custom_call.1} parent=1 // pred_fallthru
      _
    // Predicated region
    $region26: #{tpu_custom_call.1} parent=1 // pred_check
      _
    $region27: #{tpu_custom_call.1} parent=1 // pred_check_branch
      %1253 = sbr.rel (0) target = $region29
    $region28: #{tpu_custom_call.1} parent=1 // pred_region
      %s1255 = ssub.s32 1024, 1024
      %1256 = vsyncadd [#allocation5], %s1255
      %s1257 = sshll.u32 [#allocation4], 4
      %s1258 = int_to_ptr.vmem [resolvable:$true] %s1257
      %1263 = dma.vmem_to_hbm [thread:$0]  %s1258, 1024, %s6, [#allocation5], 128, 128, 8
    $region29: #{tpu_custom_call.1} parent=1 // pred_fallthru
      _
    // Predicated region
    $region30: #{tpu_custom_call.1} parent=1 // pred_check
      _
    $region31: #{tpu_custom_call.1} parent=1 // pred_check_branch
      %1265 = sbr.rel (0) target = $region33
    $region32: #{tpu_custom_call.1} parent=1 // pred_region
      _
    $region33: #{tpu_custom_call.1} parent=1 // pred_fallthru
      _
    // Predicated region
    $region34: #{tpu_custom_call.1} parent=1 // pred_check
      _
    $region35: #{tpu_custom_call.1} parent=1 // pred_check_branch
      %1267 = sbr.rel (0) target = $region37
    $region36: #{tpu_custom_call.1} parent=1 // pred_region
      %1268 = dma.done [#allocation3], 1024
    $region37: #{tpu_custom_call.1} parent=1 // pred_fallthru
      _
    // Predicated region
    $region38: #{tpu_custom_call.1} parent=1 // pred_check
      _
    $region39: #{tpu_custom_call.1} parent=1 // pred_check_branch
      %1270 = sbr.rel (0) target = $region41
    $region40: #{tpu_custom_call.1} parent=1 // pred_region
      %1271 = dma.done [#allocation5], 1024
    $region41: #{tpu_custom_call.1} parent=1 // pred_fallthru
      _
    // Predicated region
    $region42: #{tpu_custom_call.1} parent=1 // pred_check
      _
    $region43: #{tpu_custom_call.1} parent=1 // pred_check_branch
      %1273 = sbr.rel (0) target = $region45
    $region44: #{tpu_custom_call.1} parent=1 // pred_region
      _
    $region45: #{tpu_custom_call.1} parent=1 // pred_fallthru
      _
    %1274 = vsyncpa [#allocation3], 1
    %1275 = vsyncpa [#allocation5], 1

</llo_original>
